<compile_context>
chip_gen: v7x
topology: tpu7x:2x2x1
jax: 0.10.0
libtpu: 0.0.40
codegen_flags: <defaults>
</compile_context>

<pallas_src>
import functools

import jax
import jax.numpy as jnp
from jax.experimental import pallas as pl
from jax.experimental.pallas import tpu as pltpu


def _round_up(x: int, m: int) -> int:
    return ((x + m - 1) // m) * m


def _logreg_kernel_fused(x_ref, w_ref, b_ref, o_ref):
    # Single-K-tile path: x_ref (tm, K), w_ref (K, tn), b_ref (1, tn), o_ref (tm, tn)
    z = jnp.dot(x_ref[...], w_ref[...], preferred_element_type=jnp.float32)
    z = z + b_ref[...]  # (tm, tn) + (1, tn) broadcast
    o_ref[...] = jax.nn.sigmoid(z).astype(o_ref.dtype)


def _logreg_kernel_acc(x_ref, w_ref, b_ref, o_ref, acc_ref):
    # Reduction path: x_ref (tm, tk), w_ref (tk, tn), b_ref (1, tn), o_ref (tm, tn)
    @pl.when(pl.program_id(2) == 0)
    def _():
        acc_ref[...] = jnp.zeros_like(acc_ref)

    acc_ref[...] += jnp.dot(
        x_ref[...], w_ref[...], preferred_element_type=jnp.float32
    )

    @pl.when(pl.program_id(2) == pl.num_programs(2) - 1)
    def _():
        z = acc_ref[...] + b_ref[...]
        o_ref[...] = jax.nn.sigmoid(z).astype(o_ref.dtype)


@functools.partial(jax.jit, static_argnames=("tm", "tn", "tk"))
def logistic_regression(x, weight, bias, *, tm=256, tn=256, tk=512):
    """sigmoid(x @ weight.T + bias).

    x:      (B, in_dim)
    weight: (out_dim, in_dim)   -- PyTorch nn.Linear layout
    bias:   (out_dim,)
    """
    M, K = x.shape
    N, Kw = weight.shape
    assert K == Kw, "weight/in_dim mismatch"
    assert bias.shape == (N,)

    # Shrink tiles for small problems while keeping (8, 128) alignment.
    tm = min(tm, _round_up(M, 8))
    tn = min(tn, _round_up(N, 128))
    tk = min(tk, _round_up(K, 128))

    M_pad = _round_up(M, tm)
    N_pad = _round_up(N, tn)
    K_pad = _round_up(K, tk)

    # Lane-dense, tile-aligned operands (zero padding is exact for matmul).
    x_p = jnp.pad(x, ((0, M_pad - M), (0, K_pad - K)))
    w_p = jnp.pad(weight.T, ((0, K_pad - K), (0, N_pad - N)))           # (K_pad, N_pad)
    b_p = jnp.pad(
        bias.astype(jnp.float32).reshape(1, N), ((0, 0), (0, N_pad - N))
    )                                                                    # (1, N_pad) f32

    gm, gn, gk = M_pad // tm, N_pad // tn, K_pad // tk
    out_shape = jax.ShapeDtypeStruct((M_pad, N_pad), x.dtype)

    flops = 2 * M_pad * N_pad * K_pad
    bytes_accessed = (
        x_p.size * x_p.dtype.itemsize
        + w_p.size * w_p.dtype.itemsize
        + b_p.size * b_p.dtype.itemsize
        + M_pad * N_pad * x.dtype.itemsize
    )
    cost = pl.CostEstimate(
        flops=flops, transcendentals=M_pad * N_pad, bytes_accessed=bytes_accessed
    )

    if gk == 1:
        # Whole reduction dim fits in one tile: no scratch, no reduction axis.
        out_p = pl.pallas_call(
            _logreg_kernel_fused,
            out_shape=out_shape,
            grid_spec=pltpu.PrefetchScalarGridSpec(
                num_scalar_prefetch=0,
                grid=(gm, gn),
                in_specs=[
                    pl.BlockSpec((tm, K_pad), lambda i, j: (i, 0)),   # x tile
                    pl.BlockSpec((K_pad, tn), lambda i, j: (0, j)),   # w tile
                    pl.BlockSpec((1, tn), lambda i, j: (0, j)),       # bias row
                ],
                out_specs=pl.BlockSpec((tm, tn), lambda i, j: (i, j)),
            ),
            compiler_params=pltpu.CompilerParams(
                dimension_semantics=("parallel", "parallel"),
                vmem_limit_bytes=64 << 20,
            ),
            cost_estimate=cost,
        )(x_p, w_p, b_p)
    else:
        out_p = pl.pallas_call(
            _logreg_kernel_acc,
            out_shape=out_shape,
            grid_spec=pltpu.PrefetchScalarGridSpec(
                num_scalar_prefetch=0,
                grid=(gm, gn, gk),
                in_specs=[
                    pl.BlockSpec((tm, tk), lambda i, j, k: (i, k)),   # x tile
                    pl.BlockSpec((tk, tn), lambda i, j, k: (k, j)),   # w tile
                    pl.BlockSpec((1, tn), lambda i, j, k: (0, j)),    # bias row (resident over k)
                ],
                out_specs=pl.BlockSpec((tm, tn), lambda i, j, k: (i, j)),
                scratch_shapes=[pltpu.VMEM((tm, tn), jnp.float32)],
            ),
            compiler_params=pltpu.CompilerParams(
                dimension_semantics=("parallel", "parallel", "arbitrary"),
                vmem_limit_bytes=64 << 20,
            ),
            cost_estimate=cost,
        )(x_p, w_p, b_p)

    return out_p[:M, :N]


def reference(x, weight, bias):
    return jax.nn.sigmoid(x @ weight.T + bias)


if __name__ == "__main__":
    # Small shapes consistent with the module: batch=8, input_dim=32, output_dim=16.
    B, IN_DIM, OUT_DIM = 8, 32, 16

    key = jax.random.PRNGKey(0)
    kx, kw, kb = jax.random.split(key, 3)
    x = jax.random.normal(kx, (B, IN_DIM), dtype=jnp.float32)
    weight = jax.random.normal(kw, (OUT_DIM, IN_DIM), dtype=jnp.float32) * 0.1
    bias = jax.random.normal(kb, (OUT_DIM,), dtype=jnp.float32) * 0.1

    out = logistic_regression(x, weight, bias)
    out = jax.block_until_ready(out)

    ref = reference(x, weight, bias)
    assert out.shape == (B, OUT_DIM)
    assert jnp.allclose(out, ref, rtol=1e-5, atol=1e-5), "mismatch vs reference"

    # Also exercise the K-reduction path with a larger, non-aligned problem.
    kx2, kw2, kb2 = jax.random.split(jax.random.PRNGKey(1), 3)
    x2 = jax.random.normal(kx2, (130, 700), dtype=jnp.float32)
    w2 = jax.random.normal(kw2, (50, 700), dtype=jnp.float32) * 0.05
    b2 = jax.random.normal(kb2, (50,), dtype=jnp.float32) * 0.05
    out2 = jax.block_until_ready(logistic_regression(x2, w2, b2, tk=512))
    assert jnp.allclose(out2, reference(x2, w2, b2), rtol=1e-5, atol=1e-5)

    print("KERNEL_OK")
</pallas_src>

<mosaic_0001>
module attributes {stable_mosaic.version = 11 : i64} {
  func.func @_logreg_kernel_fused(%arg0: i32, %arg1: i32, %arg2: memref<8x128xf32, #tpu.memory_space<vmem>>, %arg3: memref<128x128xf32, #tpu.memory_space<vmem>>, %arg4: memref<1x128xf32, #tpu.memory_space<vmem>>, %arg5: memref<8x128xf32, #tpu.memory_space<vmem>>) attributes {dimension_semantics = [#tpu.dimension_semantics<parallel>, #tpu.dimension_semantics<parallel>], iteration_bounds = array<i64: 1, 1>, scalar_prefetch = 0 : i64, scratch_operands = 0 : i64, tpu.core_type = #tpu.core_type<tc>, window_params = [{transform_indices = @transform_0, window_bounds = array<i64: 8, 128>}, {transform_indices = @transform_1, window_bounds = array<i64: 128, 128>}, {transform_indices = @transform_2, window_bounds = array<i64: 1, 128>}, {transform_indices = @transform_3, window_bounds = array<i64: 8, 128>}]} {
    %c0 = arith.constant 0 : index
    %c0_0 = arith.constant 0 : index
    %0 = vector.load %arg2[%c0, %c0_0] : memref<8x128xf32, #tpu.memory_space<vmem>>, vector<8x128xf32>
    %c0_1 = arith.constant 0 : index
    %c0_2 = arith.constant 0 : index
    %1 = vector.load %arg3[%c0_1, %c0_2] : memref<128x128xf32, #tpu.memory_space<vmem>>, vector<128x128xf32>
    %cst = arith.constant dense<0.000000e+00> : vector<8x128xf32>
    %2 = tpu.matmul %0, %1, %cst {dimension_numbers = #tpu.dot_dimension_numbers<[1], [0], [0], [1], [0, 0, 1, 1], [], []>} : vector<8x128xf32>, vector<128x128xf32>, vector<8x128xf32> -> vector<8x128xf32>
    %c0_3 = arith.constant 0 : index
    %c0_4 = arith.constant 0 : index
    %3 = vector.load %arg4[%c0_3, %c0_4] : memref<1x128xf32, #tpu.memory_space<vmem>>, vector<1x128xf32>
    %4 = vector.broadcast %3 : vector<1x128xf32> to vector<8x128xf32>
    %5 = arith.addf %2, %4 : vector<8x128xf32>
    %6 = arith.negf %5 : vector<8x128xf32>
    %7 = math.exp %6 : vector<8x128xf32>
    %cst_5 = arith.constant 1.000000e+00 : f32
    %8 = vector.broadcast %cst_5 : f32 to vector<8x128xf32>
    %9 = arith.addf %8, %7 : vector<8x128xf32>
    %10 = arith.divf %8, %9 : vector<8x128xf32>
    %c0_6 = arith.constant 0 : index
    %c0_7 = arith.constant 0 : index
    %11 = vector.load %arg5[%c0_6, %c0_7] : memref<8x128xf32, #tpu.memory_space<vmem>>, vector<8x128xf32>
    tpu.vector_store %arg5[%c0_6, %c0_7], %10 {strides = array<i32>} : memref<8x128xf32, #tpu.memory_space<vmem>>, vector<8x128xf32>,
    return
  }
  func.func @transform_0(%arg0: i32, %arg1: i32) -> (i32, i32) {
    %c0_i32 = arith.constant 0 : i32
    %c0_i32_0 = arith.constant 0 : i32
    return %arg0, %c0_i32 : i32, i32
  }
  func.func @transform_1(%arg0: i32, %arg1: i32) -> (i32, i32) {
    %c0_i32 = arith.constant 0 : i32
    %c0_i32_0 = arith.constant 0 : i32
    return %c0_i32, %arg1 : i32, i32
  }
  func.func @transform_2(%arg0: i32, %arg1: i32) -> (i32, i32) {
    %c0_i32 = arith.constant 0 : i32
    %c0_i32_0 = arith.constant 0 : i32
    return %c0_i32, %arg1 : i32, i32
  }
  func.func @transform_3(%arg0: i32, %arg1: i32) -> (i32, i32) {
    %c0_i32 = arith.constant 0 : i32
    return %arg0, %arg1 : i32, i32
  }
}

</mosaic_0001>

<llo_original>
// kernel: logistic_regression.1
$region0: #{logistic_regression.1}
  #allocation0 [shape = 'u32[]', space=smem, size = 0x4, offset = 0x4, fixed_abs, tag = 'smem constant byte address 0x4 - core index']
  #allocation1 [shape = 'u32[144,128]{1,0:T(1,128)}', space=vmem, size = 0x12000, scoped, tag = 'internal scratch']
  %s0 = inlined_call_operand.hbm [shape: f32[8,128], index: 0, kind: input, shape index: {}]
  %s1 = inlined_call_operand.hbm [shape: f32[128,128], index: 1, kind: input, shape index: {}]
  %s2 = inlined_call_operand.hbm [shape: f32[1,128], index: 2, kind: input, shape index: {}]
  %s3 = inlined_call_operand.hbm [shape: f32[8,128], index: 3, kind: output, shape index: {}]
  %s4 = sld [smem:[#allocation0]]
  $region34: #{logistic_regression.1} parent=0
    _
  %s6 = ssub.s32 1, %s4
  %s7 = scalar_select 0, %s6, %s4
  $region1: #{logistic_regression.1} parent=0
    #allocation2 [shape = 'u8[4096]{0}', space=vmem, size = 0x1000, scoped, tag = 'input window, operand 0, single buffered']
    #allocation3 [shape = 's32[1]{0}', space=sflag, size = 0x4, scoped, tag = 'scoped memory for logistic_regression.1']
    #allocation4 [shape = 's32[1]{0}', space=sflag, size = 0x4, scoped, tag = 'scoped memory for logistic_regression.1']
    #allocation5 [shape = 'u8[65536]{0}', space=vmem, size = 0x10000, scoped, tag = 'input window, operand 1, single buffered']
    #allocation6 [shape = 's32[1]{0}', space=sflag, size = 0x4, scoped, tag = 'scoped memory for logistic_regression.1']
    #allocation7 [shape = 'u8[512]{0}', space=vmem, size = 0x400, scoped, tag = 'input window, operand 2, single buffered']
    #allocation8 [shape = 'u8[4096]{0}', space=vmem, size = 0x1000, scoped, tag = 'output window, operand 0, single buffered']
    %8 = vsyncpa [#allocation3], 0
    %9 = vsyncpa [#allocation6], 0
    %10 = vsyncpa [#allocation4], 0
    // Predicated region
    $region2: #{logistic_regression.1} parent=1 // pred_check
      _
    $region3: #{logistic_regression.1} parent=1 // pred_check_branch
      %12 = sbr.rel (0) target = $region5
    $region4: #{logistic_regression.1} parent=1 // pred_region
      %s14 = ssub.s32 128, 128
      %15 = vsyncadd [#allocation3], %s14
      %s17 = sshll.u32 [#allocation2], 4
      %s18 = int_to_ptr.vmem [resolvable:$true] %s17
      %20 = dma.hbm_to_vmem [thread:$0]  %s0, 128, %s18, [#allocation3]
    $region5: #{logistic_regression.1} parent=1 // pred_fallthru
      _
    // Predicated region
    $region6: #{logistic_regression.1} parent=1 // pred_check
      _
    $region7: #{logistic_regression.1} parent=1 // pred_check_branch
      %22 = sbr.rel (0) target = $region9
    $region8: #{logistic_regression.1} parent=1 // pred_region
      %s24 = ssub.s32 2048, 2048
      %25 = vsyncadd [#allocation6], %s24
      %s26 = sshll.u32 [#allocation5], 4
      %s27 = int_to_ptr.vmem [resolvable:$true] %s26
      %32 = dma.hbm_to_vmem [thread:$0]  %s1, 2048, %s27, [#allocation6], 128, 128, 8
    $region9: #{logistic_regression.1} parent=1 // pred_fallthru
      _
    // Predicated region
    $region10: #{logistic_regression.1} parent=1 // pred_check
      _
    $region11: #{logistic_regression.1} parent=1 // pred_check_branch
      %34 = sbr.rel (0) target = $region13
    $region12: #{logistic_regression.1} parent=1 // pred_region
      %s36 = ssub.s32 16, 16
      %37 = vsyncadd [#allocation6], %s36
      %s39 = sshll.u32 [#allocation7], 4
      %s40 = int_to_ptr.vmem [resolvable:$true] %s39
      %42 = dma.hbm_to_vmem [thread:$0]  %s2, 16, %s40, [#allocation6]
    $region13: #{logistic_regression.1} parent=1 // pred_fallthru
      _
    // Predicated region
    $region14: #{logistic_regression.1} parent=1 // pred_check
      _
    $region15: #{logistic_regression.1} parent=1 // pred_check_branch
      %44 = sbr.rel (0) target = $region17
    $region16: #{logistic_regression.1} parent=1 // pred_region
      %45 = dma.done [#allocation3], 128
    $region17: #{logistic_regression.1} parent=1 // pred_fallthru
      _
    // Predicated region
    $region18: #{logistic_regression.1} parent=1 // pred_check
      _
    $region19: #{logistic_regression.1} parent=1 // pred_check_branch
      %47 = sbr.rel (0) target = $region21
    $region20: #{logistic_regression.1} parent=1 // pred_region
      %48 = dma.done [#allocation6], 2048
    $region21: #{logistic_regression.1} parent=1 // pred_fallthru
      _
    // Predicated region
    $region22: #{logistic_regression.1} parent=1 // pred_check
      _
    $region23: #{logistic_regression.1} parent=1 // pred_check_branch
      %50 = sbr.rel (0) target = $region25
    $region24: #{logistic_regression.1} parent=1 // pred_region
      %51 = dma.done [#allocation6], 16
    $region25: #{logistic_regression.1} parent=1 // pred_fallthru
      _
    %v52 = vld [vmem:[#allocation2] sm:$0xff]
    %v53 = vld [vmem:[#allocation5] sm:$0xff]
    %v54 = vld [vmem:[#allocation5 + $0x8] sm:$0xff]
    %v55 = vld [vmem:[#allocation5 + $0x10] sm:$0xff]
    %v56 = vld [vmem:[#allocation5 + $0x18] sm:$0xff]
    %v57 = vld [vmem:[#allocation5 + $0x20] sm:$0xff]
    %v58 = vld [vmem:[#allocation5 + $0x28] sm:$0xff]
    %v59 = vld [vmem:[#allocation5 + $0x30] sm:$0xff]
    %v60 = vld [vmem:[#allocation5 + $0x38] sm:$0xff]
    %v61 = vld [vmem:[#allocation5 + $0x40] sm:$0xff]
    %v62 = vld [vmem:[#allocation5 + $0x48] sm:$0xff]
    %v63 = vld [vmem:[#allocation5 + $0x50] sm:$0xff]
    %v64 = vld [vmem:[#allocation5 + $0x58] sm:$0xff]
    %v65 = vld [vmem:[#allocation5 + $0x60] sm:$0xff]
    %v66 = vld [vmem:[#allocation5 + $0x68] sm:$0xff]
    %v67 = vld [vmem:[#allocation5 + $0x70] sm:$0xff]
    %v68 = vld [vmem:[#allocation5 + $0x78] sm:$0xff]
    %v69 = vld [vmem:[#allocation7] sm:$0x1]
    %v71 = vlaneseq
    %v72 = vshrl.u32 %v71, 7
    %v73 = vsub.s32 0, %v72
    %v74 = vrot.slane %v69, %v73
    %76 = vmatprep.subr.mxu0 0.0
    %77 = vmatpush1.msra.mxu0 %v53
    %78 = vmatprep.subr.mxu0 0.0
    %79 = vmatpush1.msra.mxu0 %v54
    %80 = vmatprep.subr.mxu0 0.0
    %81 = vmatpush1.msra.mxu0 %v55
    %82 = vmatprep.subr.mxu0 0.0
    %83 = vmatpush1.msra.mxu0 %v56
    %84 = vmatprep.subr.mxu0 0.0
    %85 = vmatpush1.msra.mxu0 %v57
    %86 = vmatprep.subr.mxu0 0.0
    %87 = vmatpush1.msra.mxu0 %v58
    %88 = vmatprep.subr.mxu0 0.0
    %89 = vmatpush1.msra.mxu0 %v59
    %90 = vmatprep.subr.mxu0 0.0
    %91 = vmatpush1.msra.mxu0 %v60
    %92 = vmatprep.subr.mxu0 0.0
    %93 = vmatpush1.msra.mxu0 %v61
    %94 = vmatprep.subr.mxu0 0.0
    %95 = vmatpush1.msra.mxu0 %v62
    %96 = vmatprep.subr.mxu0 0.0
    %97 = vmatpush1.msra.mxu0 %v63
    %98 = vmatprep.subr.mxu0 0.0
    %99 = vmatpush1.msra.mxu0 %v64
    %100 = vmatprep.subr.mxu0 0.0
    %101 = vmatpush1.msra.mxu0 %v65
    %102 = vmatprep.subr.mxu0 0.0
    %103 = vmatpush1.msra.mxu0 %v66
    %104 = vmatprep.subr.mxu0 0.0
    %105 = vmatpush1.msra.mxu0 %v67
    %106 = vmatprep.subr.mxu0 0.0
    %107 = vmatpush1.msra.mxu0 %v68
    %108 = vmatprep.subr.mxu0 0.0
    %109 = vmatpush1.msra.mxu0 0.0
    %110 = vmatprep.subr.mxu0 0.0
    %111 = vmatpush1.msra.mxu0 0.0
    %112 = vmatprep.subr.mxu0 0.0
    %113 = vmatpush1.msra.mxu0 0.0
    %114 = vmatprep.subr.mxu0 0.0
    %115 = vmatpush1.msra.mxu0 0.0
    %116 = vmatprep.subr.mxu0 0.0
    %117 = vmatpush1.msra.mxu0 0.0
    %118 = vmatprep.subr.mxu0 0.0
    %119 = vmatpush1.msra.mxu0 0.0
    %120 = vmatprep.subr.mxu0 0.0
    %121 = vmatpush1.msra.mxu0 0.0
    %122 = vmatprep.subr.mxu0 0.0
    %123 = vmatpush1.msra.mxu0 0.0
    %124 = vmatprep.subr.mxu0 0.0
    %125 = vmatpush1.msra.mxu0 0.0
    %126 = vmatprep.subr.mxu0 0.0
    %127 = vmatpush1.msra.mxu0 0.0
    %128 = vmatprep.subr.mxu0 0.0
    %129 = vmatpush1.msra.mxu0 0.0
    %130 = vmatprep.subr.mxu0 0.0
    %131 = vmatpush1.msra.mxu0 0.0
    %132 = vmatprep.subr.mxu0 0.0
    %133 = vmatpush1.msra.mxu0 0.0
    %134 = vmatprep.subr.mxu0 0.0
    %135 = vmatpush1.msra.mxu0 0.0
    %136 = vmatprep.subr.mxu0 0.0
    %137 = vmatpush1.msra.mxu0 0.0
    %138 = vmatprep.subr.mxu0 0.0
    %139 = vmatpush1.msra.mxu0 0.0
    %140 = vmatprep.mubr.f32.mxu0 0.0
    %141 = vmatmul.mubr.f32.gmra.mrb[0].mxu0 %v52
    %v142 = vpop.f32.mrb[0].mxu0
    %v143 = vadd.f32 %v74, %v142
    %v144 = vpop.f32.mrb[0].mxu0
    %145 = vdwg.mxu0
    %v146 = vxor.u32 %v143, 2147483648
    %v147 = vmul.f32 %v146, 1.442695
    %v148 = vpow.pop %v147
    %v149 = vadd.f32 %v148, 1.0
    %v150 = vrcp.pop %v149
    %v151 = vmul.f32 1.0, %v150
    %152 = vst [vmem:[#allocation8] sm:$0xff] %v151
    // Predicated region
    $region26: #{logistic_regression.1} parent=1 // pred_check
      _
    $region27: #{logistic_regression.1} parent=1 // pred_check_branch
      %154 = sbr.rel (0) target = $region29
    $region28: #{logistic_regression.1} parent=1 // pred_region
      %s156 = ssub.s32 128, 128
      %157 = vsyncadd [#allocation4], %s156
      %s159 = sshll.u32 [#allocation8], 4
      %s160 = int_to_ptr.vmem [resolvable:$true] %s159
      %162 = dma.vmem_to_hbm [thread:$0]  %s160, 128, %s3, [#allocation4]
    $region29: #{logistic_regression.1} parent=1 // pred_fallthru
      _
    // Predicated region
    $region30: #{logistic_regression.1} parent=1 // pred_check
      _
    $region31: #{logistic_regression.1} parent=1 // pred_check_branch
      %164 = sbr.rel (0) target = $region33
    $region32: #{logistic_regression.1} parent=1 // pred_region
      %165 = dma.done [#allocation4], 128
    $region33: #{logistic_regression.1} parent=1 // pred_fallthru
      _
    %166 = vsyncpa [#allocation3], 1
    %167 = vsyncpa [#allocation6], 1
    %168 = vsyncpa [#allocation4], 1

</llo_original>
